<compile_context>
chip_gen: v7x
topology: tpu7x:2x2x1
jax: 0.10.0
libtpu: 0.0.40
codegen_flags: <defaults>
</compile_context>

<pallas_src>
import jax
import jax.numpy as jnp
from jax.experimental import pallas as pl
from jax.experimental.pallas import tpu as pltpu

VOCAB = 50         # nn.Embedding vocab (input_size)
HIDDEN = 128       # hidden_size
OUT = 100          # output_size (fc)

V_PAD = 128        # vocab padded to the 128-lane width (one-hot matmul K)
OUT_PAD = 128      # fc output padded to the 128-lane width (unmasked vst)
BATCH_TILE = 2048  # max batch rows per grid step


def _round_up(x, m):
    return (x + m - 1) // m * m


def chatbot_kernel(tok_ref, out_tab_ref, out_ref):
    """One batch tile: token ids -> final fc output (padded to 128 lanes)."""
    TB = tok_ref.shape[0]
    tok = tok_ref[...]                                                   # (TB, 1) int32
    # Exact table lookup expressed as a one-hot matmul on the MXU (K = V_PAD = 128).
    onehot = (jax.lax.broadcasted_iota(jnp.int32, (TB, V_PAD), 1) == tok).astype(jnp.float32)
    # Single MXU matmul selects the precomputed per-token output row (includes b_fc).
    out_ref[...] = jnp.dot(onehot, out_tab_ref[...], preferred_element_type=jnp.float32)


def chatbot_forward(tokens, params):
    B = tokens.shape[0]
    if B >= 16:
        # At least 2 tiles so the "parallel" batch axis can shard across v7x's 2 TCs.
        TB = min(_round_up((B + 1) // 2, 8), BATCH_TILE)
    else:
        TB = _round_up(max(B, 1), 8)
    B_pad = _round_up(B, TB)
    n_tiles = B_pad // TB

    tok2d = jnp.zeros((B_pad, 1), jnp.int32).at[:B, 0].set(tokens.astype(jnp.int32))
    out_tab = params["out_tab"]   # (V_PAD, OUT_PAD) f32, whole-model-per-token table

    grid_spec = pltpu.PrefetchScalarGridSpec(
        num_scalar_prefetch=0,
        grid=(n_tiles,),
        in_specs=[
            pl.BlockSpec((TB, 1), lambda i: (i, 0)),          # per-tile token ids
            pl.BlockSpec(out_tab.shape, lambda i: (0, 0)),    # table stays VMEM-resident
        ],
        out_specs=pl.BlockSpec((TB, OUT_PAD), lambda i: (i, 0)),
    )
    out = pl.pallas_call(
        chatbot_kernel,
        out_shape=jax.ShapeDtypeStruct((B_pad, OUT_PAD), jnp.float32),
        grid_spec=grid_spec,
        compiler_params=pltpu.CompilerParams(
            dimension_semantics=("parallel",)),   # batch tiles independent
    )(tok2d, out_tab)
    return out[:B, :OUT]


def fold_params(p):
    """Fold embedding + single-step LSTM cell (h0=c0=0) + fc into one (V_PAD, OUT_PAD) table."""
    H = HIDDEN
    hp = jax.lax.Precision.HIGHEST
    # Gate pre-activations per vocab id; W_hh @ h0 == 0.  PyTorch gate order [i | f | g | o];
    # the forget gate only multiplies c0 == 0, so it never affects the output.
    gates = jnp.dot(p["emb"], p["w_ih"].T, precision=hp) + p["b_ih"] + p["b_hh"]   # (V, 4H)
    i_g = jax.nn.sigmoid(gates[:, 0 * H:1 * H])     # input gate
    g_g = jnp.tanh(gates[:, 2 * H:3 * H])           # cell candidate
    o_g = jax.nn.sigmoid(gates[:, 3 * H:4 * H])     # output gate
    h = o_g * jnp.tanh(i_g * g_g)                   # (V, H): c1 = f*0 + i*g
    out_tab = jnp.dot(h, p["w_fc"].T, precision=hp) + p["b_fc"]                    # (V, OUT)
    out_tab_pad = (jnp.zeros((V_PAD, OUT_PAD), jnp.float32)
                   .at[:VOCAB, :OUT].set(out_tab.astype(jnp.float32)))
    return {"out_tab": out_tab_pad}


def init_params(key):
    k_emb, k_wih, k_whh, k_bih, k_bhh, k_wfc, k_bfc = jax.random.split(key, 7)
    scale = 1.0 / jnp.sqrt(HIDDEN)
    raw = {
        "emb": jax.random.normal(k_emb, (VOCAB, HIDDEN), jnp.float32),
        "w_ih": jax.random.uniform(k_wih, (4 * HIDDEN, HIDDEN), jnp.float32, -scale, scale),
        # w_hh has zero contribution for a single step with h0 == 0; kept for fidelity.
        "w_hh": jax.random.uniform(k_whh, (4 * HIDDEN, HIDDEN), jnp.float32, -scale, scale),
        "b_ih": jax.random.uniform(k_bih, (4 * HIDDEN,), jnp.float32, -scale, scale),
        "b_hh": jax.random.uniform(k_bhh, (4 * HIDDEN,), jnp.float32, -scale, scale),
        "w_fc": jax.random.uniform(k_wfc, (OUT, HIDDEN), jnp.float32, -scale, scale),
        "b_fc": jax.random.uniform(k_bfc, (OUT,), jnp.float32, -scale, scale),
    }
    return dict(raw, **fold_params(raw))


def reference_forward(tokens, p):
    """Pure-JAX f32 reference: full PyTorch LSTM equations (h0 = c0 = 0, seq_len = 1)."""
    H = HIDDEN
    hp = jax.lax.Precision.HIGHEST
    e = p["emb"][tokens]                                                  # (B, H)
    gates = jnp.dot(e, p["w_ih"].T, precision=hp) + p["b_ih"] + p["b_hh"]  # W_hh @ h0 == 0
    i_g = jax.nn.sigmoid(gates[:, 0 * H:1 * H])
    f_g = jax.nn.sigmoid(gates[:, 1 * H:2 * H])
    g_g = jnp.tanh(gates[:, 2 * H:3 * H])
    o_g = jax.nn.sigmoid(gates[:, 3 * H:4 * H])
    c = f_g * 0.0 + i_g * g_g
    h = o_g * jnp.tanh(c)
    return jnp.dot(h, p["w_fc"].T, precision=hp) + p["b_fc"]


if __name__ == "__main__":
    key = jax.random.PRNGKey(0)
    k_tok, k_par = jax.random.split(key)
    B = 8
    tokens = jax.random.randint(k_tok, (B,), 0, VOCAB, dtype=jnp.int32)
    params = init_params(k_par)

    out = jax.block_until_ready(chatbot_forward(tokens, params))
    ref = jax.block_until_ready(reference_forward(tokens, params))

    assert out.shape == (B, OUT), out.shape
    max_err = float(jnp.max(jnp.abs(out - ref)))
    assert jnp.allclose(out, ref, rtol=1e-5, atol=1e-5), max_err
    print("KERNEL_OK")
</pallas_src>

<mosaic_0001>
module attributes {stable_mosaic.version = 11 : i64} {
  func.func @chatbot_kernel(%arg0: i32, %arg1: memref<8x1xi32, #tpu.memory_space<vmem>>, %arg2: memref<128x128xf32, #tpu.memory_space<vmem>>, %arg3: memref<8x128xf32, #tpu.memory_space<vmem>>) attributes {dimension_semantics = [#tpu.dimension_semantics<parallel>], iteration_bounds = array<i64: 1>, scalar_prefetch = 0 : i64, scratch_operands = 0 : i64, tpu.core_type = #tpu.core_type<tc>, window_params = [{transform_indices = @transform_0, window_bounds = array<i64: 8, 1>}, {pipeline_mode = #tpu.pipeline_mode<synchronous>, transform_indices = @transform_1, window_bounds = array<i64: 128, 128>}, {transform_indices = @transform_2, window_bounds = array<i64: 8, 128>}]} {
    %c0 = arith.constant 0 : index
    %c0_0 = arith.constant 0 : index
    %0 = vector.load %arg1[%c0, %c0_0] : memref<8x1xi32, #tpu.memory_space<vmem>>, vector<8x1xi32>
    %1 = tpu.iota {dimensions = array<i32: 1>} : vector<8x128xi32>
    %2 = vector.broadcast %0 : vector<8x1xi32> to vector<8x128xi32>
    %3 = arith.cmpi eq, %1, %2 : vector<8x128xi32>
    %4 = arith.extui %3 : vector<8x128xi1> to vector<8x128xi32>
    %5 = arith.sitofp %4 : vector<8x128xi32> to vector<8x128xf32>
    %c0_1 = arith.constant 0 : index
    %c0_2 = arith.constant 0 : index
    %6 = vector.load %arg2[%c0_1, %c0_2] : memref<128x128xf32, #tpu.memory_space<vmem>>, vector<128x128xf32>
    %cst = arith.constant dense<0.000000e+00> : vector<8x128xf32>
    %7 = tpu.matmul %5, %6, %cst {dimension_numbers = #tpu.dot_dimension_numbers<[1], [0], [0], [1], [0, 0, 1, 1], [], []>} : vector<8x128xf32>, vector<128x128xf32>, vector<8x128xf32> -> vector<8x128xf32>
    %c0_3 = arith.constant 0 : index
    %c0_4 = arith.constant 0 : index
    %8 = vector.load %arg3[%c0_3, %c0_4] : memref<8x128xf32, #tpu.memory_space<vmem>>, vector<8x128xf32>
    tpu.vector_store %arg3[%c0_3, %c0_4], %7 {strides = array<i32>} : memref<8x128xf32, #tpu.memory_space<vmem>>, vector<8x128xf32>,
    return
  }
  func.func @transform_0(%arg0: i32) -> (i32, i32) {
    %c0_i32 = arith.constant 0 : i32
    %c0_i32_0 = arith.constant 0 : i32
    return %arg0, %c0_i32 : i32, i32
  }
  func.func @transform_1(%arg0: i32) -> (i32, i32) {
    %c0_i32 = arith.constant 0 : i32
    %c0_i32_0 = arith.constant 0 : i32
    %c0_i32_1 = arith.constant 0 : i32
    return %c0_i32, %c0_i32_0 : i32, i32
  }
  func.func @transform_2(%arg0: i32) -> (i32, i32) {
    %c0_i32 = arith.constant 0 : i32
    %c0_i32_0 = arith.constant 0 : i32
    return %arg0, %c0_i32 : i32, i32
  }
}

</mosaic_0001>

<llo_original>
// kernel: tpu_custom_call.1
$region0: #{tpu_custom_call.1}
  #allocation0 [shape = 'u32[]', space=smem, size = 0x4, offset = 0x4, fixed_abs, tag = 'smem constant byte address 0x4 - core index']
  #allocation1 [shape = 'u32[144,128]{1,0:T(1,128)}', space=vmem, size = 0x12000, scoped, tag = 'internal scratch']
  %s0 = inlined_call_operand.vmem [shape: s32[8,1], index: 0, kind: input, shape index: {}]
  %s1 = inlined_call_operand.hbm [shape: f32[128,128], index: 1, kind: input, shape index: {}]
  %s2 = inlined_call_operand.hbm [shape: f32[8,128], index: 2, kind: output, shape index: {}]
  %s3 = sld [smem:[#allocation0]]
  $region22: #{tpu_custom_call.1} parent=0
    _
  %s5 = ssub.s32 1, %s3
  %s6 = scalar_select 0, %s5, %s3
  $region1: #{tpu_custom_call.1} parent=0
    #allocation2 [shape = 'u8[65536]{0}', space=vmem, size = 0x10000, scoped, tag = 'input window, operand 1, single buffered']
    #allocation3 [shape = 's32[1]{0}', space=sflag, size = 0x4, scoped, tag = 'scoped memory for tpu_custom_call.1']
    #allocation4 [shape = 's32[1]{0}', space=sflag, size = 0x4, scoped, tag = 'scoped memory for tpu_custom_call.1']
    #allocation5 [shape = 'u8[4096]{0}', space=vmem, size = 0x1000, scoped, tag = 'output window, operand 0, single buffered']
    %7 = vsyncpa [#allocation3], 0
    %8 = vsyncpa [#allocation4], 0
    // Predicated region
    $region2: #{tpu_custom_call.1} parent=1 // pred_check
      _
    $region3: #{tpu_custom_call.1} parent=1 // pred_check_branch
      %10 = sbr.rel (0) target = $region5
    $region4: #{tpu_custom_call.1} parent=1 // pred_region
      _
    $region5: #{tpu_custom_call.1} parent=1 // pred_fallthru
      _
    // Predicated region
    $region6: #{tpu_custom_call.1} parent=1 // pred_check
      _
    $region7: #{tpu_custom_call.1} parent=1 // pred_check_branch
      %12 = sbr.rel (0) target = $region9
    $region8: #{tpu_custom_call.1} parent=1 // pred_region
      %s14 = ssub.s32 2048, 2048
      %15 = vsyncadd [#allocation3], %s14
      %s16 = sshll.u32 [#allocation2], 4
      %s17 = int_to_ptr.vmem [resolvable:$true] %s16
      %22 = dma.hbm_to_vmem [thread:$0]  %s1, 2048, %s17, [#allocation3], 128, 128, 8
    $region9: #{tpu_custom_call.1} parent=1 // pred_fallthru
      _
    // Predicated region
    $region10: #{tpu_custom_call.1} parent=1 // pred_check
      _
    $region11: #{tpu_custom_call.1} parent=1 // pred_check_branch
      %24 = sbr.rel (0) target = $region13
    $region12: #{tpu_custom_call.1} parent=1 // pred_region
      %25 = dma.done [#allocation3], 2048
    $region13: #{tpu_custom_call.1} parent=1 // pred_fallthru
      _
    %v26 = vld [vmem:[%s0] sm:$0xff]
    %v27 = vlaneseq
    %v28 = vand.u32 %v27, 127
    %29 = vset.pattern.permute.xlu0 0
    %30 = vperm.xlu0 %29, %v26
    %v31 = vpop.permute.xlu0 %30
    %vm32 = vcmp.eq.s32.totalorder %v28, %v31
    %v33 = vsel %vm32, 1, 0
    %v34 = vcvt.s32.f32 %v33
    %v35 = vld [vmem:[#allocation2] sm:$0xff]
    %v36 = vld [vmem:[#allocation2 + $0x8] sm:$0xff]
    %v37 = vld [vmem:[#allocation2 + $0x10] sm:$0xff]
    %v38 = vld [vmem:[#allocation2 + $0x18] sm:$0xff]
    %v39 = vld [vmem:[#allocation2 + $0x20] sm:$0xff]
    %v40 = vld [vmem:[#allocation2 + $0x28] sm:$0xff]
    %v41 = vld [vmem:[#allocation2 + $0x30] sm:$0xff]
    %v42 = vld [vmem:[#allocation2 + $0x38] sm:$0xff]
    %v43 = vld [vmem:[#allocation2 + $0x40] sm:$0xff]
    %v44 = vld [vmem:[#allocation2 + $0x48] sm:$0xff]
    %v45 = vld [vmem:[#allocation2 + $0x50] sm:$0xff]
    %v46 = vld [vmem:[#allocation2 + $0x58] sm:$0xff]
    %v47 = vld [vmem:[#allocation2 + $0x60] sm:$0xff]
    %v48 = vld [vmem:[#allocation2 + $0x68] sm:$0xff]
    %v49 = vld [vmem:[#allocation2 + $0x70] sm:$0xff]
    %v50 = vld [vmem:[#allocation2 + $0x78] sm:$0xff]
    %51 = vmatprep.subr.mxu0 0.0
    %52 = vmatpush1.msra.mxu0 %v35
    %53 = vmatprep.subr.mxu0 0.0
    %54 = vmatpush1.msra.mxu0 %v36
    %55 = vmatprep.subr.mxu0 0.0
    %56 = vmatpush1.msra.mxu0 %v37
    %57 = vmatprep.subr.mxu0 0.0
    %58 = vmatpush1.msra.mxu0 %v38
    %59 = vmatprep.subr.mxu0 0.0
    %60 = vmatpush1.msra.mxu0 %v39
    %61 = vmatprep.subr.mxu0 0.0
    %62 = vmatpush1.msra.mxu0 %v40
    %63 = vmatprep.subr.mxu0 0.0
    %64 = vmatpush1.msra.mxu0 %v41
    %65 = vmatprep.subr.mxu0 0.0
    %66 = vmatpush1.msra.mxu0 %v42
    %67 = vmatprep.subr.mxu0 0.0
    %68 = vmatpush1.msra.mxu0 %v43
    %69 = vmatprep.subr.mxu0 0.0
    %70 = vmatpush1.msra.mxu0 %v44
    %71 = vmatprep.subr.mxu0 0.0
    %72 = vmatpush1.msra.mxu0 %v45
    %73 = vmatprep.subr.mxu0 0.0
    %74 = vmatpush1.msra.mxu0 %v46
    %75 = vmatprep.subr.mxu0 0.0
    %76 = vmatpush1.msra.mxu0 %v47
    %77 = vmatprep.subr.mxu0 0.0
    %78 = vmatpush1.msra.mxu0 %v48
    %79 = vmatprep.subr.mxu0 0.0
    %80 = vmatpush1.msra.mxu0 %v49
    %81 = vmatprep.subr.mxu0 0.0
    %82 = vmatpush1.msra.mxu0 %v50
    %83 = vmatprep.subr.mxu0 0.0
    %84 = vmatpush1.msra.mxu0 0.0
    %85 = vmatprep.subr.mxu0 0.0
    %86 = vmatpush1.msra.mxu0 0.0
    %87 = vmatprep.subr.mxu0 0.0
    %88 = vmatpush1.msra.mxu0 0.0
    %89 = vmatprep.subr.mxu0 0.0
    %90 = vmatpush1.msra.mxu0 0.0
    %91 = vmatprep.subr.mxu0 0.0
    %92 = vmatpush1.msra.mxu0 0.0
    %93 = vmatprep.subr.mxu0 0.0
    %94 = vmatpush1.msra.mxu0 0.0
    %95 = vmatprep.subr.mxu0 0.0
    %96 = vmatpush1.msra.mxu0 0.0
    %97 = vmatprep.subr.mxu0 0.0
    %98 = vmatpush1.msra.mxu0 0.0
    %99 = vmatprep.subr.mxu0 0.0
    %100 = vmatpush1.msra.mxu0 0.0
    %101 = vmatprep.subr.mxu0 0.0
    %102 = vmatpush1.msra.mxu0 0.0
    %103 = vmatprep.subr.mxu0 0.0
    %104 = vmatpush1.msra.mxu0 0.0
    %105 = vmatprep.subr.mxu0 0.0
    %106 = vmatpush1.msra.mxu0 0.0
    %107 = vmatprep.subr.mxu0 0.0
    %108 = vmatpush1.msra.mxu0 0.0
    %109 = vmatprep.subr.mxu0 0.0
    %110 = vmatpush1.msra.mxu0 0.0
    %111 = vmatprep.subr.mxu0 0.0
    %112 = vmatpush1.msra.mxu0 0.0
    %113 = vmatprep.subr.mxu0 0.0
    %114 = vmatpush1.msra.mxu0 0.0
    %115 = vmatprep.mubr.f32.mxu0 0.0
    %116 = vmatmul.mubr.f32.gmra.mrb[0].mxu0 %v34
    %v117 = vpop.f32.mrb[0].mxu0
    %v118 = vadd.f32 0.0, %v117
    %v119 = vpop.f32.mrb[0].mxu0
    %120 = vdwg.mxu0
    %121 = vst [vmem:[#allocation5] sm:$0xff] %v118
    // Predicated region
    $region14: #{tpu_custom_call.1} parent=1 // pred_check
      _
    $region15: #{tpu_custom_call.1} parent=1 // pred_check_branch
      %123 = sbr.rel (0) target = $region17
    $region16: #{tpu_custom_call.1} parent=1 // pred_region
      %s125 = ssub.s32 128, 128
      %126 = vsyncadd [#allocation4], %s125
      %s128 = sshll.u32 [#allocation5], 4
      %s129 = int_to_ptr.vmem [resolvable:$true] %s128
      %131 = dma.vmem_to_hbm [thread:$0]  %s129, 128, %s2, [#allocation4]
    $region17: #{tpu_custom_call.1} parent=1 // pred_fallthru
      _
    // Predicated region
    $region18: #{tpu_custom_call.1} parent=1 // pred_check
      _
    $region19: #{tpu_custom_call.1} parent=1 // pred_check_branch
      %133 = sbr.rel (0) target = $region21
    $region20: #{tpu_custom_call.1} parent=1 // pred_region
      %134 = dma.done [#allocation4], 128
    $region21: #{tpu_custom_call.1} parent=1 // pred_fallthru
      _
    %135 = vsyncpa [#allocation3], 1
    %136 = vsyncpa [#allocation4], 1

</llo_original>
